<compile_context>
chip_gen: v5e
topology: v5e:2x2
jax: 0.10.0
libtpu: 0.0.40
codegen_flags: <defaults>
</compile_context>

<pallas_src>
from functools import partial

import jax
import jax.numpy as jnp
from jax import lax
from jax.experimental import pallas as pl
from jax.experimental.pallas import tpu as pltpu


_TM_MAX = 512   # batch tile (covers the whole batch for typical DQN sizes)
_TN_MAX = 256   # output-feature tile (multiple of 128)
_TK_MAX = 512   # reduction tile


def _round_up(v, m):
    return ((v + m - 1) // m) * m


def _pad2(a, rows, cols):
    pr, pc = rows - a.shape[0], cols - a.shape[1]
    if pr or pc:
        a = jnp.pad(a, ((0, pr), (0, pc)))
    return a


def _noisy_linear_kernel_single_k(x_ref, wmu_ref, wsig_ref, ein_ref, eout_ref,
                                  b_ref, o_ref):
    """in_dim fits in one K tile: no accumulator, no phase gating."""
    x = x_ref[...]                           # (tm, tk) f32
    xs = x * ein_ref[...]                    # rank-1 noise folded into the input
    cdt = wmu_ref.dtype
    y_mu = lax.dot_general(
        x.astype(cdt), wmu_ref[...],
        dimension_numbers=(((1,), (1,)), ((), ())),
        preferred_element_type=jnp.float32)
    y_sig = lax.dot_general(
        xs.astype(cdt), wsig_ref[...],
        dimension_numbers=(((1,), (1,)), ((), ())),
        preferred_element_type=jnp.float32)
    o_ref[...] = (y_mu + eout_ref[...] * y_sig + b_ref[...]).astype(o_ref.dtype)


def _noisy_linear_kernel_acc(x_ref, wmu_ref, wsig_ref, ein_ref, eout_ref,
                             b_ref, o_ref, acc_ref):
    """General K-tiled path with an f32 VMEM accumulator."""
    k = pl.program_id(2)

    @pl.when(k == 0)
    def _():
        acc_ref[...] = jnp.zeros_like(acc_ref)

    x = x_ref[...]
    xs = x * ein_ref[...]
    cdt = wmu_ref.dtype
    y_mu = lax.dot_general(
        x.astype(cdt), wmu_ref[...],
        dimension_numbers=(((1,), (1,)), ((), ())),
        preferred_element_type=jnp.float32)
    y_sig = lax.dot_general(
        xs.astype(cdt), wsig_ref[...],
        dimension_numbers=(((1,), (1,)), ((), ())),
        preferred_element_type=jnp.float32)
    # eps_out distributes over the K sum, so one accumulator suffices.
    acc_ref[...] += y_mu + eout_ref[...] * y_sig

    @pl.when(k == pl.num_programs(2) - 1)
    def _():
        o_ref[...] = (acc_ref[...] + b_ref[...]).astype(o_ref.dtype)


@partial(jax.jit, static_argnames=("weights_dtype",))
def noisy_linear(x, weight_mu, weight_sigma, epsilon_in, epsilon_out,
                 bias_mu, bias_sigma, bias_epsilon, *,
                 weights_dtype=jnp.float32):
    """y = x @ (w_mu + w_sigma * outer(eps_out, eps_in)).T + (b_mu + b_sigma*b_eps)."""
    B, in_dim = x.shape
    out_dim = weight_mu.shape[0]

    # --- tile sizes (lane-dense, MXU-aligned) -------------------------------
    tm = min(_TM_MAX, _round_up(B, 8))
    m_p = _round_up(B, tm)

    n128 = _round_up(out_dim, 128)
    tn = min(_TN_MAX, n128)
    # v7x megacore: if the batch is a single M tile, keep >= 2 N blocks.
    if (m_p // tm) == 1 and (n128 // tn) < 2 and n128 >= 256:
        tn = 128
    n_p = _round_up(n128, tn)

    tk = min(_TK_MAX, _round_up(in_dim, 128))
    k_p = _round_up(in_dim, tk)

    m_blocks, n_blocks, k_blocks = m_p // tm, n_p // tn, k_p // tk

    # --- padded, lane-dense operands ---------------------------------------
    x_p = _pad2(x, m_p, k_p)
    wmu_p = _pad2(weight_mu.astype(weights_dtype), n_p, k_p)
    wsig_p = _pad2(weight_sigma.astype(weights_dtype), n_p, k_p)
    ein_p = _pad2(epsilon_in.reshape(1, in_dim).astype(jnp.float32), 1, k_p)
    eout_p = _pad2(epsilon_out.reshape(1, out_dim).astype(jnp.float32), 1, n_p)
    # Bias combine is O(out): do it in the wrapper, ship one lane-dense row.
    bias_p = _pad2((bias_mu + bias_sigma * bias_epsilon)
                   .reshape(1, out_dim).astype(jnp.float32), 1, n_p)

    wbytes = jnp.dtype(weights_dtype).itemsize
    cost = pl.CostEstimate(
        flops=4 * m_p * n_p * k_p                 # two matmuls
              + 2 * m_p * k_p * n_blocks          # x * eps_in per j block
              + 3 * m_p * n_p,                    # eps_out scale + bias add
        transcendentals=0,
        bytes_accessed=(4 * m_p * k_p * n_blocks            # x, per j block
                        + 2 * wbytes * n_p * k_p * m_blocks  # w_mu + w_sigma
                        + 4 * (k_p + 2 * n_p)                 # noise rows, bias
                        + 4 * m_p * n_p))                     # output

    compiler_params_2d = pltpu.CompilerParams(
        dimension_semantics=("parallel", "parallel"),
        vmem_limit_bytes=32 * 1024 * 1024)
    compiler_params_3d = pltpu.CompilerParams(
        dimension_semantics=("parallel", "parallel", "arbitrary"),
        vmem_limit_bytes=32 * 1024 * 1024)

    if k_blocks == 1:
        # Common NoisyLinear case: whole reduction in one tile, no scratch.
        out_p = pl.pallas_call(
            _noisy_linear_kernel_single_k,
            out_shape=jax.ShapeDtypeStruct((m_p, n_p), x.dtype),
            grid=(m_blocks, n_blocks),
            in_specs=[
                pl.BlockSpec((tm, tk), lambda i, j: (i, 0)),   # x
                pl.BlockSpec((tn, tk), lambda i, j: (j, 0)),   # weight_mu
                pl.BlockSpec((tn, tk), lambda i, j: (j, 0)),   # weight_sigma
                pl.BlockSpec((1, tk), lambda i, j: (0, 0)),    # eps_in row
                pl.BlockSpec((1, tn), lambda i, j: (0, j)),    # eps_out row
                pl.BlockSpec((1, tn), lambda i, j: (0, j)),    # combined bias
            ],
            out_specs=pl.BlockSpec((tm, tn), lambda i, j: (i, j)),
            compiler_params=compiler_params_2d,
            cost_estimate=cost,
        )(x_p, wmu_p, wsig_p, ein_p, eout_p, bias_p)
    else:
        out_p = pl.pallas_call(
            _noisy_linear_kernel_acc,
            out_shape=jax.ShapeDtypeStruct((m_p, n_p), x.dtype),
            grid=(m_blocks, n_blocks, k_blocks),
            in_specs=[
                pl.BlockSpec((tm, tk), lambda i, j, k: (i, k)),   # x
                pl.BlockSpec((tn, tk), lambda i, j, k: (j, k)),   # weight_mu
                pl.BlockSpec((tn, tk), lambda i, j, k: (j, k)),   # weight_sigma
                pl.BlockSpec((1, tk), lambda i, j, k: (0, k)),    # eps_in row
                pl.BlockSpec((1, tn), lambda i, j, k: (0, j)),    # eps_out row
                pl.BlockSpec((1, tn), lambda i, j, k: (0, j)),    # combined bias
            ],
            out_specs=pl.BlockSpec((tm, tn), lambda i, j, k: (i, j)),
            scratch_shapes=[pltpu.VMEM((tm, tn), jnp.float32)],
            compiler_params=compiler_params_3d,
            cost_estimate=cost,
        )(x_p, wmu_p, wsig_p, ein_p, eout_p, bias_p)

    return out_p[:B, :out_dim]


def _scale_noise(key, size):
    # noise = sign(n) * sqrt(|n|), n ~ N(0, 1)   (NoisyLinear.scale_noise)
    n = jax.random.normal(key, (size,), dtype=jnp.float32)
    return jnp.sign(n) * jnp.sqrt(jnp.abs(n))


def make_noisy_linear_params(key, input_dim, output_dim, std_init=0.5):
    """Mirrors __init__ / reset_parameter / reset_noise of the PyTorch module.

    Returns the factored weight noise (epsilon_in, epsilon_out); the module's
    weight_epsilon buffer is exactly outer(epsilon_out, epsilon_in)."""
    k_wmu, k_bmu, k_ein, k_eout, k_beps = jax.random.split(key, 5)
    mu_range = 1.0 / jnp.sqrt(jnp.float32(input_dim))

    weight_mu = jax.random.uniform(
        k_wmu, (output_dim, input_dim), jnp.float32, -mu_range, mu_range)
    bias_mu = jax.random.uniform(
        k_bmu, (output_dim,), jnp.float32, -mu_range, mu_range)

    weight_sigma = jnp.full((output_dim, input_dim),
                            std_init / jnp.sqrt(jnp.float32(input_dim)),
                            dtype=jnp.float32)
    bias_sigma = jnp.full((output_dim,),
                          std_init / jnp.sqrt(jnp.float32(output_dim)),
                          dtype=jnp.float32)

    epsilon_in = _scale_noise(k_ein, input_dim)       # (in,)
    epsilon_out = _scale_noise(k_eout, output_dim)    # (out,)
    bias_epsilon = _scale_noise(k_beps, output_dim)   # fresh draw, as in the spec

    return (weight_mu, weight_sigma, epsilon_in, epsilon_out,
            bias_mu, bias_sigma, bias_epsilon)


def _run_case(key, batch, input_dim, output_dim):
    k_params, k_x = jax.random.split(key)
    (weight_mu, weight_sigma, epsilon_in, epsilon_out,
     bias_mu, bias_sigma, bias_epsilon) = make_noisy_linear_params(
        k_params, input_dim, output_dim, std_init=0.5)

    x = jax.random.normal(k_x, (batch, input_dim), dtype=jnp.float32)

    out = noisy_linear(x, weight_mu, weight_sigma, epsilon_in, epsilon_out,
                       bias_mu, bias_sigma, bias_epsilon)
    out = jax.block_until_ready(out)

    # Reference = exact PyTorch forward with weight_epsilon materialized as
    # the module's reset_noise would (ger of the two factors).
    weight_epsilon = jnp.outer(epsilon_out, epsilon_in)
    w = weight_mu + weight_sigma * weight_epsilon
    b = bias_mu + bias_sigma * bias_epsilon
    ref = x @ w.T + b

    assert out.shape == (batch, output_dim)
    assert jnp.allclose(out, ref, atol=1e-3, rtol=1e-3), (
        float(jnp.max(jnp.abs(out - ref))))


if __name__ == "__main__":
    key = jax.random.PRNGKey(0)
    k1, k2 = jax.random.split(key)

    # Small case (single-K kernel, grid (1, 1)).
    _run_case(k1, batch=8, input_dim=128, output_dim=64)
    # Larger case exercising the K-accumulator kernel and >=2 N blocks.
    _run_case(k2, batch=32, input_dim=640, output_dim=256)

    print("KERNEL_OK")
</pallas_src>

<mosaic_0001>
module attributes {stable_mosaic.version = 11 : i64} {
  func.func @_noisy_linear_kernel_single_k(%arg0: i32, %arg1: i32, %arg2: memref<8x128xf32, #tpu.memory_space<vmem>>, %arg3: memref<128x128xf32, #tpu.memory_space<vmem>>, %arg4: memref<128x128xf32, #tpu.memory_space<vmem>>, %arg5: memref<1x128xf32, #tpu.memory_space<vmem>>, %arg6: memref<1x128xf32, #tpu.memory_space<vmem>>, %arg7: memref<1x128xf32, #tpu.memory_space<vmem>>, %arg8: memref<8x128xf32, #tpu.memory_space<vmem>>) attributes {dimension_semantics = [#tpu.dimension_semantics<parallel>, #tpu.dimension_semantics<parallel>], iteration_bounds = array<i64: 1, 1>, scalar_prefetch = 0 : i64, scratch_operands = 0 : i64, tpu.core_type = #tpu.core_type<tc>, window_params = [{transform_indices = @transform_0, window_bounds = array<i64: 8, 128>}, {transform_indices = @transform_1, window_bounds = array<i64: 128, 128>}, {transform_indices = @transform_2, window_bounds = array<i64: 128, 128>}, {pipeline_mode = #tpu.pipeline_mode<synchronous>, transform_indices = @transform_3, window_bounds = array<i64: 1, 128>}, {transform_indices = @transform_4, window_bounds = array<i64: 1, 128>}, {transform_indices = @transform_5, window_bounds = array<i64: 1, 128>}, {transform_indices = @transform_6, window_bounds = array<i64: 8, 128>}]} {
    %c0 = arith.constant 0 : index
    %c0_0 = arith.constant 0 : index
    %0 = vector.load %arg2[%c0, %c0_0] : memref<8x128xf32, #tpu.memory_space<vmem>>, vector<8x128xf32>
    %c0_1 = arith.constant 0 : index
    %c0_2 = arith.constant 0 : index
    %1 = vector.load %arg5[%c0_1, %c0_2] : memref<1x128xf32, #tpu.memory_space<vmem>>, vector<1x128xf32>
    %2 = vector.broadcast %1 : vector<1x128xf32> to vector<8x128xf32>
    %3 = arith.mulf %0, %2 : vector<8x128xf32>
    %c0_3 = arith.constant 0 : index
    %c0_4 = arith.constant 0 : index
    %4 = vector.load %arg3[%c0_3, %c0_4] : memref<128x128xf32, #tpu.memory_space<vmem>>, vector<128x128xf32>
    %cst = arith.constant dense<0.000000e+00> : vector<8x128xf32>
    %5 = tpu.matmul %0, %4, %cst {dimension_numbers = #tpu.dot_dimension_numbers<[1], [1], [0], [0], [0, 0, 1, 0], [], []>} : vector<8x128xf32>, vector<128x128xf32>, vector<8x128xf32> -> vector<8x128xf32>
    %c0_5 = arith.constant 0 : index
    %c0_6 = arith.constant 0 : index
    %6 = vector.load %arg4[%c0_5, %c0_6] : memref<128x128xf32, #tpu.memory_space<vmem>>, vector<128x128xf32>
    %cst_7 = arith.constant dense<0.000000e+00> : vector<8x128xf32>
    %7 = tpu.matmul %3, %6, %cst_7 {dimension_numbers = #tpu.dot_dimension_numbers<[1], [1], [0], [0], [0, 0, 1, 0], [], []>} : vector<8x128xf32>, vector<128x128xf32>, vector<8x128xf32> -> vector<8x128xf32>
    %c0_8 = arith.constant 0 : index
    %c0_9 = arith.constant 0 : index
    %8 = vector.load %arg6[%c0_8, %c0_9] : memref<1x128xf32, #tpu.memory_space<vmem>>, vector<1x128xf32>
    %9 = vector.broadcast %8 : vector<1x128xf32> to vector<8x128xf32>
    %10 = arith.mulf %9, %7 : vector<8x128xf32>
    %11 = arith.addf %5, %10 : vector<8x128xf32>
    %c0_10 = arith.constant 0 : index
    %c0_11 = arith.constant 0 : index
    %12 = vector.load %arg7[%c0_10, %c0_11] : memref<1x128xf32, #tpu.memory_space<vmem>>, vector<1x128xf32>
    %13 = vector.broadcast %12 : vector<1x128xf32> to vector<8x128xf32>
    %14 = arith.addf %11, %13 : vector<8x128xf32>
    %c0_12 = arith.constant 0 : index
    %c0_13 = arith.constant 0 : index
    %15 = vector.load %arg8[%c0_12, %c0_13] : memref<8x128xf32, #tpu.memory_space<vmem>>, vector<8x128xf32>
    tpu.vector_store %arg8[%c0_12, %c0_13], %14 {strides = array<i32>} : memref<8x128xf32, #tpu.memory_space<vmem>>, vector<8x128xf32>,
    return
  }
  func.func @transform_0(%arg0: i32, %arg1: i32) -> (i32, i32) {
    %c0_i32 = arith.constant 0 : i32
    %c0_i32_0 = arith.constant 0 : i32
    return %arg0, %c0_i32 : i32, i32
  }
  func.func @transform_1(%arg0: i32, %arg1: i32) -> (i32, i32) {
    %c0_i32 = arith.constant 0 : i32
    %c0_i32_0 = arith.constant 0 : i32
    return %arg1, %c0_i32 : i32, i32
  }
  func.func @transform_2(%arg0: i32, %arg1: i32) -> (i32, i32) {
    %c0_i32 = arith.constant 0 : i32
    %c0_i32_0 = arith.constant 0 : i32
    return %arg1, %c0_i32 : i32, i32
  }
  func.func @transform_3(%arg0: i32, %arg1: i32) -> (i32, i32) {
    %c0_i32 = arith.constant 0 : i32
    %c0_i32_0 = arith.constant 0 : i32
    %c0_i32_1 = arith.constant 0 : i32
    return %c0_i32, %c0_i32_0 : i32, i32
  }
  func.func @transform_4(%arg0: i32, %arg1: i32) -> (i32, i32) {
    %c0_i32 = arith.constant 0 : i32
    %c0_i32_0 = arith.constant 0 : i32
    return %c0_i32, %arg1 : i32, i32
  }
  func.func @transform_5(%arg0: i32, %arg1: i32) -> (i32, i32) {
    %c0_i32 = arith.constant 0 : i32
    %c0_i32_0 = arith.constant 0 : i32
    return %c0_i32, %arg1 : i32, i32
  }
  func.func @transform_6(%arg0: i32, %arg1: i32) -> (i32, i32) {
    %c0_i32 = arith.constant 0 : i32
    return %arg0, %arg1 : i32, i32
  }
}

</mosaic_0001>

<llo_original>
// kernel: noisy_linear.1
$region0: #{noisy_linear.1}
  #allocation0 [shape = 'u32[]', space=smem, size = 0x4, offset = 0x4, fixed_abs, tag = 'smem constant byte address 0x4 - core index']
  #allocation1 [shape = 'u32[72,128]{1,0:T(1,128)}', space=vmem, size = 0x9000, scoped, tag = 'internal scratch']
  %s0 = inlined_call_operand.vmem [shape: f32[8,128], index: 0, kind: input, shape index: {}]
  %s1 = inlined_call_operand.vmem [shape: f32[128,128], index: 1, kind: input, shape index: {}]
  %s2 = inlined_call_operand.vmem [shape: f32[128,128], index: 2, kind: input, shape index: {}]
  %s3 = inlined_call_operand.vmem [shape: f32[1,128], index: 3, kind: input, shape index: {}]
  %s4 = inlined_call_operand.vmem [shape: f32[1,128], index: 4, kind: input, shape index: {}]
  %s5 = inlined_call_operand.vmem [shape: f32[1,128], index: 5, kind: input, shape index: {}]
  %s6 = inlined_call_operand.hbm [shape: f32[8,128], index: 6, kind: output, shape index: {}]
  %s7 = sld [smem:[#allocation0]]
  $region34: #{noisy_linear.1} parent=0
    _
  %s9 = ssub.s32 1, %s7
  %s10 = scalar_select 0, %s9, %s7
  $region1: #{noisy_linear.1} parent=0
    #allocation2 [shape = 'u8[4096]{0}', space=vmem, size = 0x1000, scoped, tag = 'output window, operand 0, single buffered']
    #allocation3 [shape = 's32[1]{0}', space=sflag, size = 0x4, scoped, tag = 'scoped memory for noisy_linear.1']
    %11 = vsyncpa [#allocation3], 0
    // Predicated region
    $region2: #{noisy_linear.1} parent=1 // pred_check
      _
    $region3: #{noisy_linear.1} parent=1 // pred_check_branch
      %13 = sbr.rel (0) target = $region5
    $region4: #{noisy_linear.1} parent=1 // pred_region
      _
    $region5: #{noisy_linear.1} parent=1 // pred_fallthru
      _
    // Predicated region
    $region6: #{noisy_linear.1} parent=1 // pred_check
      _
    $region7: #{noisy_linear.1} parent=1 // pred_check_branch
      %15 = sbr.rel (0) target = $region9
    $region8: #{noisy_linear.1} parent=1 // pred_region
      _
    $region9: #{noisy_linear.1} parent=1 // pred_fallthru
      _
    // Predicated region
    $region10: #{noisy_linear.1} parent=1 // pred_check
      _
    $region11: #{noisy_linear.1} parent=1 // pred_check_branch
      %17 = sbr.rel (0) target = $region13
    $region12: #{noisy_linear.1} parent=1 // pred_region
      _
    $region13: #{noisy_linear.1} parent=1 // pred_fallthru
      _
    // Predicated region
    $region14: #{noisy_linear.1} parent=1 // pred_check
      _
    $region15: #{noisy_linear.1} parent=1 // pred_check_branch
      %19 = sbr.rel (0) target = $region17
    $region16: #{noisy_linear.1} parent=1 // pred_region
      _
    $region17: #{noisy_linear.1} parent=1 // pred_fallthru
      _
    // Predicated region
    $region18: #{noisy_linear.1} parent=1 // pred_check
      _
    $region19: #{noisy_linear.1} parent=1 // pred_check_branch
      %21 = sbr.rel (0) target = $region21
    $region20: #{noisy_linear.1} parent=1 // pred_region
      _
    $region21: #{noisy_linear.1} parent=1 // pred_fallthru
      _
    // Predicated region
    $region22: #{noisy_linear.1} parent=1 // pred_check
      _
    $region23: #{noisy_linear.1} parent=1 // pred_check_branch
      %23 = sbr.rel (0) target = $region25
    $region24: #{noisy_linear.1} parent=1 // pred_region
      _
    $region25: #{noisy_linear.1} parent=1 // pred_fallthru
      _
    %v24 = vld [vmem:[%s0] sm:$0xff]
    %v25 = vld [vmem:[%s3] sm:$0x1]
    %v27 = vperm.slane %v25, 0
    %v29 = vmul.f32 %v24, %v27
    %v30 = vld [vmem:[%s1] sm:$0xff]
    %v31 = vld [vmem:[%s1 + $0x8] sm:$0xff]
    %v32 = vld [vmem:[%s1 + $0x10] sm:$0xff]
    %v33 = vld [vmem:[%s1 + $0x18] sm:$0xff]
    %v34 = vld [vmem:[%s1 + $0x20] sm:$0xff]
    %v35 = vld [vmem:[%s1 + $0x28] sm:$0xff]
    %v36 = vld [vmem:[%s1 + $0x30] sm:$0xff]
    %v37 = vld [vmem:[%s1 + $0x38] sm:$0xff]
    %v38 = vld [vmem:[%s1 + $0x40] sm:$0xff]
    %v39 = vld [vmem:[%s1 + $0x48] sm:$0xff]
    %v40 = vld [vmem:[%s1 + $0x50] sm:$0xff]
    %v41 = vld [vmem:[%s1 + $0x58] sm:$0xff]
    %v42 = vld [vmem:[%s1 + $0x60] sm:$0xff]
    %v43 = vld [vmem:[%s1 + $0x68] sm:$0xff]
    %v44 = vld [vmem:[%s1 + $0x70] sm:$0xff]
    %v45 = vld [vmem:[%s1 + $0x78] sm:$0xff]
    %v46 = vld [vmem:[%s2] sm:$0xff]
    %v47 = vld [vmem:[%s2 + $0x8] sm:$0xff]
    %v48 = vld [vmem:[%s2 + $0x10] sm:$0xff]
    %v49 = vld [vmem:[%s2 + $0x18] sm:$0xff]
    %v50 = vld [vmem:[%s2 + $0x20] sm:$0xff]
    %v51 = vld [vmem:[%s2 + $0x28] sm:$0xff]
    %v52 = vld [vmem:[%s2 + $0x30] sm:$0xff]
    %v53 = vld [vmem:[%s2 + $0x38] sm:$0xff]
    %v54 = vld [vmem:[%s2 + $0x40] sm:$0xff]
    %v55 = vld [vmem:[%s2 + $0x48] sm:$0xff]
    %v56 = vld [vmem:[%s2 + $0x50] sm:$0xff]
    %v57 = vld [vmem:[%s2 + $0x58] sm:$0xff]
    %v58 = vld [vmem:[%s2 + $0x60] sm:$0xff]
    %v59 = vld [vmem:[%s2 + $0x68] sm:$0xff]
    %v60 = vld [vmem:[%s2 + $0x70] sm:$0xff]
    %v61 = vld [vmem:[%s2 + $0x78] sm:$0xff]
    %62 = vmatpush.xpose.msra.mxu0 %v61
    %63 = vmatpush.xpose.msra.mxu0 %v60
    %64 = vmatpush.xpose.msra.mxu0 %v59
    %65 = vmatpush.xpose.msra.mxu0 %v58
    %66 = vmatpush.xpose.msra.mxu0 %v57
    %67 = vmatpush.xpose.msra.mxu0 %v56
    %68 = vmatpush.xpose.msra.mxu0 %v55
    %69 = vmatpush.xpose.msra.mxu0 %v54
    %70 = vmatpush.xpose.msra.mxu0 %v53
    %71 = vmatpush.xpose.msra.mxu0 %v52
    %72 = vmatpush.xpose.msra.mxu0 %v51
    %73 = vmatpush.xpose.msra.mxu0 %v50
    %74 = vmatpush.xpose.msra.mxu0 %v49
    %75 = vmatpush.xpose.msra.mxu0 %v48
    %76 = vmatpush.xpose.msra.mxu0 %v47
    %77 = vmatpush.xpose.msra.mxu0 %v46
    %78 = vmatmul.f32.gmra.mxu0 %v29
    %v79 = vpop.f32.mrf.mxu0
    %v80 = vadd.f32 0.0, %v79
    %81 = vdwg.mxu0
    %v82 = vld [vmem:[%s4] sm:$0x1]
    %v84 = vperm.slane %v82, 0
    %v86 = vmul.f32 %v84, %v80
    %87 = vmatpush.xpose.msra.mxu0 %v45
    %88 = vmatpush.xpose.msra.mxu0 %v44
    %89 = vmatpush.xpose.msra.mxu0 %v43
    %90 = vmatpush.xpose.msra.mxu0 %v42
    %91 = vmatpush.xpose.msra.mxu0 %v41
    %92 = vmatpush.xpose.msra.mxu0 %v40
    %93 = vmatpush.xpose.msra.mxu0 %v39
    %94 = vmatpush.xpose.msra.mxu0 %v38
    %95 = vmatpush.xpose.msra.mxu0 %v37
    %96 = vmatpush.xpose.msra.mxu0 %v36
    %97 = vmatpush.xpose.msra.mxu0 %v35
    %98 = vmatpush.xpose.msra.mxu0 %v34
    %99 = vmatpush.xpose.msra.mxu0 %v33
    %100 = vmatpush.xpose.msra.mxu0 %v32
    %101 = vmatpush.xpose.msra.mxu0 %v31
    %102 = vmatpush.xpose.msra.mxu0 %v30
    %103 = vmatmul.f32.gmra.mxu0 %v24
    %v104 = vpop.f32.mrf.mxu0
    %v105 = vadd.f32 %v86, %v104
    %106 = vdwg.mxu0
    %v107 = vld [vmem:[%s5] sm:$0x1]
    %v109 = vperm.slane %v107, 0
    %v111 = vadd.f32 %v105, %v109
    %112 = vst [vmem:[#allocation2] sm:$0xff] %v111
    // Predicated region
    $region26: #{noisy_linear.1} parent=1 // pred_check
      _
    $region27: #{noisy_linear.1} parent=1 // pred_check_branch
      %114 = sbr.rel (0) target = $region29
    $region28: #{noisy_linear.1} parent=1 // pred_region
      %116 = vsyncadd [#allocation3], 0
      %s118 = sshll.u32 [#allocation2], 4
      %s119 = int_to_ptr.vmem [resolvable:$true] %s118
      %s120 = sshll.u32 %s6, 4
      %s121 = int_to_ptr.hbm [resolvable:$true] %s120
      %123 = dma.vmem_to_hbm [thread:$0]  %s119, 128, %s121, [#allocation3]
    $region29: #{noisy_linear.1} parent=1 // pred_fallthru
      _
    // Predicated region
    $region30: #{noisy_linear.1} parent=1 // pred_check
      _
    $region31: #{noisy_linear.1} parent=1 // pred_check_branch
      %125 = sbr.rel (0) target = $region33
    $region32: #{noisy_linear.1} parent=1 // pred_region
      %127 = dma.done [#allocation3], 128
    $region33: #{noisy_linear.1} parent=1 // pred_fallthru
      _
    %128 = vsyncpa [#allocation3], 1

</llo_original>
